<compile_context>
chip_gen: v7x
topology: tpu7x:2x2x1
jax: 0.10.0
libtpu: 0.0.40
codegen_flags: <defaults>
</compile_context>

<pallas_src>
import jax
import jax.numpy as jnp
from jax import lax
from jax.experimental import pallas as pl
from jax.experimental.pallas import tpu as pltpu


def linear_kernel(x_ref, w_ref, b_ref, o_ref):
    # x_ref: (tm, K), w_ref: (N, K) torch-style, b_ref: (1, N), o_ref: (tm, N)
    # Contract x's last dim against w's last dim -> (tm, N), add bias, store.
    o_ref[...] = (
        lax.dot_general(
            x_ref[...],
            w_ref[...],
            dimension_numbers=(((1,), (1,)), ((), ())),
            preferred_element_type=jnp.float32,
        )
        + b_ref[...]
    ).astype(o_ref.dtype)


def linear_pallas(x, weight, bias):
    """x: (..., K); weight: (N, K) torch-style; bias: (N,). Returns (..., N)."""
    orig_shape = x.shape
    K = orig_shape[-1]
    N, Kw = weight.shape
    assert K == Kw
    x2 = x.reshape(-1, K)
    M = x2.shape[0]
    b2 = bias.reshape(1, N)

    # Full N / full K tiles (fills the 256x256 MXU on v6e/v7x).
    # Split M into two equal "parallel" blocks when possible so v7x's two
    # TensorCores are both used; otherwise run a single grid step.
    if M % 2 == 0 and (M // 2) % 8 == 0:
        tm = M // 2
    else:
        tm = M
    grid = (M // tm,)

    out = pl.pallas_call(
        linear_kernel,
        out_shape=jax.ShapeDtypeStruct((M, N), x.dtype),
        grid_spec=pltpu.PrefetchScalarGridSpec(
            num_scalar_prefetch=0,
            grid=grid,
            in_specs=[
                pl.BlockSpec((tm, K), lambda i: (i, 0)),  # x rows
                pl.BlockSpec((N, K), lambda i: (0, 0)),   # full weight (N, K)
                pl.BlockSpec((1, N), lambda i: (0, 0)),   # bias
            ],
            out_specs=pl.BlockSpec((tm, N), lambda i: (i, 0)),
        ),
        compiler_params=pltpu.CompilerParams(
            dimension_semantics=("parallel",)
        ),
    )(x2, weight, b2)

    return out.reshape(*orig_shape[:-1], N)


if __name__ == "__main__":
    key = jax.random.PRNGKey(0)
    kx, kw, kb = jax.random.split(key, 3)

    B, S, H = 1, 384, 256  # shapes implied by the module (Linear 256 -> 256)
    x = jax.random.normal(kx, (B, S, H), dtype=jnp.float32)

    # Deterministic parameter init (torch.nn.Linear-style uniform bounds).
    bound = 1.0 / (H ** 0.5)
    weight = jax.random.uniform(kw, (H, H), minval=-bound, maxval=bound,
                                dtype=jnp.float32)
    bias = jax.random.uniform(kb, (H,), minval=-bound, maxval=bound,
                              dtype=jnp.float32)

    y = linear_pallas(x, weight, bias)
    jax.block_until_ready(y)

    # Sanity check against plain JAX reference.
    y_ref = x @ weight.T + bias
    assert y.shape == (B, S, H)
    assert jnp.allclose(y, y_ref, atol=1e-4, rtol=1e-4)

    print("KERNEL_OK")
</pallas_src>

<mosaic_0001>
module attributes {stable_mosaic.version = 11 : i64} {
  func.func @linear_kernel(%arg0: i32, %arg1: memref<192x256xf32, #tpu.memory_space<vmem>>, %arg2: memref<256x256xf32, #tpu.memory_space<vmem>>, %arg3: memref<1x256xf32, #tpu.memory_space<vmem>>, %arg4: memref<192x256xf32, #tpu.memory_space<vmem>>) attributes {dimension_semantics = [#tpu.dimension_semantics<parallel>], iteration_bounds = array<i64: 2>, scalar_prefetch = 0 : i64, scratch_operands = 0 : i64, tpu.core_type = #tpu.core_type<tc>, window_params = [{transform_indices = @transform_0, window_bounds = array<i64: 192, 256>}, {pipeline_mode = #tpu.pipeline_mode<synchronous>, transform_indices = @transform_1, window_bounds = array<i64: 256, 256>}, {pipeline_mode = #tpu.pipeline_mode<synchronous>, transform_indices = @transform_2, window_bounds = array<i64: 1, 256>}, {transform_indices = @transform_3, window_bounds = array<i64: 192, 256>}]} {
    %c0 = arith.constant 0 : index
    %c0_0 = arith.constant 0 : index
    %0 = vector.load %arg1[%c0, %c0_0] : memref<192x256xf32, #tpu.memory_space<vmem>>, vector<192x256xf32>
    %c0_1 = arith.constant 0 : index
    %c0_2 = arith.constant 0 : index
    %1 = vector.load %arg2[%c0_1, %c0_2] : memref<256x256xf32, #tpu.memory_space<vmem>>, vector<256x256xf32>
    %cst = arith.constant dense<0.000000e+00> : vector<192x256xf32>
    %2 = tpu.matmul %0, %1, %cst {dimension_numbers = #tpu.dot_dimension_numbers<[1], [1], [0], [0], [0, 0, 1, 0], [], []>} : vector<192x256xf32>, vector<256x256xf32>, vector<192x256xf32> -> vector<192x256xf32>
    %c0_3 = arith.constant 0 : index
    %c0_4 = arith.constant 0 : index
    %3 = vector.load %arg3[%c0_3, %c0_4] : memref<1x256xf32, #tpu.memory_space<vmem>>, vector<1x256xf32>
    %4 = vector.broadcast %3 : vector<1x256xf32> to vector<192x256xf32>
    %5 = arith.addf %2, %4 : vector<192x256xf32>
    %c0_5 = arith.constant 0 : index
    %c0_6 = arith.constant 0 : index
    %6 = vector.load %arg4[%c0_5, %c0_6] : memref<192x256xf32, #tpu.memory_space<vmem>>, vector<192x256xf32>
    tpu.vector_store %arg4[%c0_5, %c0_6], %5 {strides = array<i32>} : memref<192x256xf32, #tpu.memory_space<vmem>>, vector<192x256xf32>,
    return
  }
  func.func @transform_0(%arg0: i32) -> (i32, i32) {
    %c0_i32 = arith.constant 0 : i32
    %c0_i32_0 = arith.constant 0 : i32
    return %arg0, %c0_i32 : i32, i32
  }
  func.func @transform_1(%arg0: i32) -> (i32, i32) {
    %c0_i32 = arith.constant 0 : i32
    %c0_i32_0 = arith.constant 0 : i32
    %c0_i32_1 = arith.constant 0 : i32
    return %c0_i32, %c0_i32_0 : i32, i32
  }
  func.func @transform_2(%arg0: i32) -> (i32, i32) {
    %c0_i32 = arith.constant 0 : i32
    %c0_i32_0 = arith.constant 0 : i32
    %c0_i32_1 = arith.constant 0 : i32
    return %c0_i32, %c0_i32_0 : i32, i32
  }
  func.func @transform_3(%arg0: i32) -> (i32, i32) {
    %c0_i32 = arith.constant 0 : i32
    %c0_i32_0 = arith.constant 0 : i32
    return %arg0, %c0_i32 : i32, i32
  }
}

</mosaic_0001>

<llo_original>
// kernel: tpu_custom_call.1
$region0: #{tpu_custom_call.1}
  #allocation0 [shape = 'u32[]', space=smem, size = 0x4, offset = 0x4, fixed_abs, tag = 'smem constant byte address 0x4 - core index']
  #allocation1 [shape = 'u32[144,128]{1,0:T(1,128)}', space=vmem, size = 0x12000, scoped, tag = 'internal scratch']
  %s0 = inlined_call_operand.hbm [shape: f32[384,256], index: 0, kind: input, shape index: {}]
  %s1 = inlined_call_operand.hbm [shape: f32[256,256], index: 1, kind: input, shape index: {}]
  %s2 = inlined_call_operand.vmem [shape: f32[1,256], index: 2, kind: input, shape index: {}]
  %s3 = inlined_call_operand.hbm [shape: f32[384,256], index: 3, kind: output, shape index: {}]
  %s4 = sld [smem:[#allocation0]]
  $region53: #{tpu_custom_call.1} parent=0
    _
  %s6 = ssub.s32 1, %s4
  %s7 = scalar_select 0, %s6, %s4
  $region1: #{tpu_custom_call.1} parent=0
    #allocation2 [shape = 'u8[393216]{0}', space=vmem, size = 0x60000, scoped, tag = 'input window, operand 0']
    #allocation3 [shape = 's32[2]{0}', space=sflag, size = 0x8, scoped, tag = 'scoped memory for tpu_custom_call.1']
    #allocation4 [shape = 's32[2]{0}', space=sflag, size = 0x8, scoped, tag = 'scoped memory for tpu_custom_call.1']
    #allocation5 [shape = 'u8[262144]{0}', space=vmem, size = 0x40000, scoped, tag = 'input window, operand 1, single buffered']
    #allocation6 [shape = 's32[1]{0}', space=sflag, size = 0x4, scoped, tag = 'scoped memory for tpu_custom_call.1']
    #allocation7 [shape = 'u8[393216]{0}', space=vmem, size = 0x60000, scoped, tag = 'output window, operand 0']
    %8 = vsyncpa [#allocation3], 0
    %s9 = scalar_lea.sflag [#allocation3], 1
    %10 = vsyncpa %s9, 0
    %11 = vsyncpa [#allocation6], 0
    %12 = vsyncpa [#allocation4], 0
    %s13 = scalar_lea.sflag [#allocation4], 1
    %14 = vsyncpa %s13, 0
    loop: start=0, step=1, limit=4
    $region2: #{tpu_custom_call.1} parent=1 // loop_pre_header
      _
    $region3: #{tpu_custom_call.1} parent=1 // loop_header
      %s16 = sphi 0, %s20
      %p17 = scmp.ge.s32.totalorder %s16, 4
      %s26 = sphi 0, %s28
      %s29 = sphi 0, %s26
      %s30 = sphi 0, %s29
      %s46 = sphi 0, %s30
      %s50 = sphi 0, %s50
      %s52 = sphi 0, %s50
      %s53 = sphi 0, %s52
      %s67 = sphi 0, %s53
      %s71 = sphi 0, %s71
      %s73 = sphi 0, %s71
      %s74 = sphi 0, %s73
      %s88 = sphi 0, %s74
      %s94 = sphi 0, %s96
      %s97 = sphi 0, %s94
      %s98 = sphi 0, %s97
      %s114 = sphi 0, %s98
    $region4: #{tpu_custom_call.1} parent=1 // loop_header_branch
      %19 = sbr.rel (%p17) target = $region8
    $region5: #{tpu_custom_call.1} parent=1 // loop_body
      %s21 = ssub.s32 %s16, 1
      %s22 = ssub.s32 %s16, 2
      %s23 = sadd.s32 %s16, 1
      %s24 = ssub.s32 %s16, %s23
      %p25 = scmp.eq.s32.totalorder %s24, 0
      %s27 = sadd.s32 %s26, 1
      %s28 = scalar_select %p25, %s26, %s27
      %p31 = pneg %p25
      %p32 = scmp.eq.s32.totalorder %s16, 1
      %p33 = por %p31, %p32
      %p34 = scmp.ne.s32.totalorder %s26, %s29
      %p35 = scmp.eq.s32.totalorder %s16, 0
      %p36 = por %p34, %p35
      %p37 = scmp.ne.s32.totalorder %s26, %s29
      %p38 = scmp.eq.s32.totalorder %s21, 1
      %p39 = por %p37, %p38
      %p40 = scmp.ne.s32.totalorder %s29, %s30
      %p41 = scmp.eq.s32.totalorder %s21, 0
      %p42 = por %p40, %p41
      %p43 = scmp.ne.s32.totalorder %s29, %s30
      %p44 = scmp.eq.s32.totalorder %s22, 1
      %p45 = por %p43, %p44
      %p47 = scmp.ne.s32.totalorder %s30, %s46
      %p48 = scmp.eq.s32.totalorder %s22, 0
      %p49 = por %p47, %p48
      %s51 = sadd.s32 %s50, 1
      %p54 = scmp.eq.s32.totalorder %s16, 1
      %p55 = scmp.ne.s32.totalorder %s50, %s52
      %p56 = scmp.eq.s32.totalorder %s16, 0
      %p57 = por %p55, %p56
      %p58 = scmp.ne.s32.totalorder %s50, %s52
      %p59 = scmp.eq.s32.totalorder %s21, 1
      %p60 = por %p58, %p59
      %p61 = scmp.ne.s32.totalorder %s52, %s53
      %p62 = scmp.eq.s32.totalorder %s21, 0
      %p63 = por %p61, %p62
      %p64 = scmp.ne.s32.totalorder %s52, %s53
      %p65 = scmp.eq.s32.totalorder %s22, 1
      %p66 = por %p64, %p65
      %p68 = scmp.ne.s32.totalorder %s53, %s67
      %p69 = scmp.eq.s32.totalorder %s22, 0
      %p70 = por %p68, %p69
      %s72 = sadd.s32 %s71, 1
      %p75 = scmp.eq.s32.totalorder %s16, 1
      %p76 = scmp.ne.s32.totalorder %s71, %s73
      %p77 = scmp.eq.s32.totalorder %s16, 0
      %p78 = por %p76, %p77
      %p79 = scmp.ne.s32.totalorder %s71, %s73
      %p80 = scmp.eq.s32.totalorder %s21, 1
      %p81 = por %p79, %p80
      %p82 = scmp.ne.s32.totalorder %s73, %s74
      %p83 = scmp.eq.s32.totalorder %s21, 0
      %p84 = por %p82, %p83
      %p85 = scmp.ne.s32.totalorder %s73, %s74
      %p86 = scmp.eq.s32.totalorder %s22, 1
      %p87 = por %p85, %p86
      %p89 = scmp.ne.s32.totalorder %s74, %s88
      %p90 = scmp.eq.s32.totalorder %s22, 0
      %p91 = por %p89, %p90
      %s92 = ssub.s32 %s16, %s23
      %p93 = scmp.eq.s32.totalorder %s92, 0
      %s95 = sadd.s32 %s94, 1
      %s96 = scalar_select %p93, %s94, %s95
      %p99 = pneg %p93
      %p100 = scmp.eq.s32.totalorder %s16, 1
      %p101 = por %p99, %p100
      %p102 = scmp.ne.s32.totalorder %s94, %s97
      %p103 = scmp.eq.s32.totalorder %s16, 0
      %p104 = por %p102, %p103
      %p105 = scmp.ne.s32.totalorder %s94, %s97
      %p106 = scmp.eq.s32.totalorder %s21, 1
      %p107 = por %p105, %p106
      %p108 = scmp.ne.s32.totalorder %s97, %s98
      %p109 = scmp.eq.s32.totalorder %s21, 0
      %p110 = por %p108, %p109
      %p111 = scmp.ne.s32.totalorder %s97, %s98
      %p112 = scmp.eq.s32.totalorder %s22, 1
      %p113 = por %p111, %p112
      %p115 = scmp.ne.s32.totalorder %s98, %s114
      %p116 = scmp.eq.s32.totalorder %s22, 0
      %p117 = por %p115, %p116
      %p118 = scmp.le.s32.totalorder 1, %s16
      %p119 = scmp.lt.s32.totalorder %s16, 3
      %p120 = pnand %p118, %p119
      %p121 = pneg %p120
      // Predicated region
      $region9: #{tpu_custom_call.1} parent=5 // pred_check
        _
      $region10: #{tpu_custom_call.1} parent=5 // pred_check_branch
        %123 = sbr.rel (%p120) target = $region12
      $region11: #{tpu_custom_call.1} parent=5 // pred_region
        %s124 = ssub.s32 %s16, 1
        // Predicated region
        $region13: #{tpu_custom_call.1} parent=11 // pred_check
          %p125 = pneg %p63
        $region14: #{tpu_custom_call.1} parent=11 // pred_check_branch
          %127 = sbr.rel (%p125) target = $region16
        $region15: #{tpu_custom_call.1} parent=11 // pred_region
          %s129 = ssub.s32 8192, 8192
          %130 = vsyncadd [#allocation6], %s129
          %s131 = sshll.u32 [#allocation5], 4
          %s132 = int_to_ptr.vmem [resolvable:$true] %s131
          %137 = dma.hbm_to_vmem [thread:$0]  %s1, 8192, %s132, [#allocation6], 256, 256, 16
        $region16: #{tpu_custom_call.1} parent=11 // pred_fallthru
          _
        // Predicated region
        $region17: #{tpu_custom_call.1} parent=11 // pred_check
          %p138 = pneg %p84
        $region18: #{tpu_custom_call.1} parent=11 // pred_check_branch
          %140 = sbr.rel (%p138) target = $region20
        $region19: #{tpu_custom_call.1} parent=11 // pred_region
          _
        $region20: #{tpu_custom_call.1} parent=11 // pred_fallthru
          _
      $region12: #{tpu_custom_call.1} parent=5 // pred_fallthru
        _
      %p141 = scmp.lt.s32.totalorder %s16, 2
      // Predicated region
      $region21: #{tpu_custom_call.1} parent=5 // pred_check
        %p142 = pneg %p141
      $region22: #{tpu_custom_call.1} parent=5 // pred_check_branch
        %144 = sbr.rel (%p142) target = $region24
      $region23: #{tpu_custom_call.1} parent=5 // pred_region
        // Predicated region
        $region25: #{tpu_custom_call.1} parent=23 // pred_check
          %p145 = pneg %p36
        $region26: #{tpu_custom_call.1} parent=23 // pred_check_branch
          %147 = sbr.rel (%p145) target = $region28
        $region27: #{tpu_custom_call.1} parent=23 // pred_region
          %s148 = sand.u32 %s26, 1
          %s149 = scalar_lea.sflag [#allocation3], %s148
          %s150 = sand.u32 %s26, 1
          %s151 = smul.addr %s150, 384
          %s152 = scalar_lea.vmem [#allocation2], %s151
          %s153 = smul.u32 24, %s16
          %s155 = ssub.s32 6144, 6144
          %156 = vsyncadd %s149, %s155
          %s157 = smul.addr %s153, 2
          %s158 = smul.addr %s157, 128
          %s159 = scalar_lea.hbm %s0, %s158
          %s160 = sshll.u32 %s152, 4
          %s161 = int_to_ptr.vmem [resolvable:$true] %s160
          %166 = dma.hbm_to_vmem [thread:$0]  %s159, 6144, %s161, %s149, 256, 256, 16
        $region28: #{tpu_custom_call.1} parent=23 // pred_fallthru
          _
      $region24: #{tpu_custom_call.1} parent=5 // pred_fallthru
        _
      %p167 = scmp.le.s32.totalorder 1, %s16
      %p168 = scmp.lt.s32.totalorder %s16, 3
      %p169 = pnand %p167, %p168
      %p170 = pneg %p169
      // Predicated region
      $region29: #{tpu_custom_call.1} parent=5 // pred_check
        _
      $region30: #{tpu_custom_call.1} parent=5 // pred_check_branch
        %172 = sbr.rel (%p169) target = $region32
      $region31: #{tpu_custom_call.1} parent=5 // pred_region
        %s173 = ssub.s32 %s16, 1
        %s174 = sand.u32 %s29, 1
        %s175 = scalar_lea.sflag [#allocation3], %s174
        %s176 = sand.u32 %s29, 1
        %s177 = smul.addr %s176, 384
        %s178 = scalar_lea.vmem [#allocation2], %s177
        // Predicated region
        $region33: #{tpu_custom_call.1} parent=31 // pred_check
          %p179 = pneg %p42
        $region34: #{tpu_custom_call.1} parent=31 // pred_check_branch
          %181 = sbr.rel (%p179) target = $region36
        $region35: #{tpu_custom_call.1} parent=31 // pred_region
          %182 = dma.done %s175, 6144
        $region36: #{tpu_custom_call.1} parent=31 // pred_fallthru
          _
        // Predicated region
        $region37: #{tpu_custom_call.1} parent=31 // pred_check
          %p183 = pneg %p63
        $region38: #{tpu_custom_call.1} parent=31 // pred_check_branch
          %185 = sbr.rel (%p183) target = $region40
        $region39: #{tpu_custom_call.1} parent=31 // pred_region
          %186 = dma.done [#allocation6], 8192
        $region40: #{tpu_custom_call.1} parent=31 // pred_fallthru
          _
        %s187 = sand.u32 %s29, 1
        %s188 = scalar_lea.sflag [#allocation3], %s187
        %s189 = sand.u32 %s29, 1
        %s190 = smul.addr %s189, 384
        %s191 = scalar_lea.vmem [#allocation2], %s190
        %p192 = pneg %p42
        %p193 = pneg %p39
        %p194 = pneg %p63
        %p195 = pneg %p60
        %p196 = pneg %p84
        %p197 = pneg %p81
        %p198 = pneg %p110
        %p199 = pneg %p107
        %s200 = sand.u32 %s97, 1
        %s201 = scalar_lea.sflag [#allocation4], %s200
        %s202 = sand.u32 %s97, 1
        %s203 = smul.addr %s202, 384
        %s204 = scalar_lea.vmem [#allocation7], %s203
        %s205 = smul.u32 24, %s21
        %s206 = smul.u32 24, %s21
        %v207 = vld [vmem:[%s178] sm:$0xff]
        %v208 = vld [vmem:[%s178 + $0x8] sm:$0xff]
        %v209 = vld [vmem:[%s178 + $0x10] sm:$0xff]
        %v210 = vld [vmem:[%s178 + $0x18] sm:$0xff]
        %v211 = vld [vmem:[%s178 + $0x20] sm:$0xff]
        %v212 = vld [vmem:[%s178 + $0x28] sm:$0xff]
        %v213 = vld [vmem:[%s178 + $0x30] sm:$0xff]
        %v214 = vld [vmem:[%s178 + $0x38] sm:$0xff]
        %v215 = vld [vmem:[%s178 + $0x40] sm:$0xff]
        %v216 = vld [vmem:[%s178 + $0x48] sm:$0xff]
        %v217 = vld [vmem:[%s178 + $0x50] sm:$0xff]
        %v218 = vld [vmem:[%s178 + $0x58] sm:$0xff]
        %v219 = vld [vmem:[%s178 + $0x60] sm:$0xff]
        %v220 = vld [vmem:[%s178 + $0x68] sm:$0xff]
        %v221 = vld [vmem:[%s178 + $0x70] sm:$0xff]
        %v222 = vld [vmem:[%s178 + $0x78] sm:$0xff]
        %v223 = vld [vmem:[%s178 + $0x80] sm:$0xff]
        %v224 = vld [vmem:[%s178 + $0x88] sm:$0xff]
        %v225 = vld [vmem:[%s178 + $0x90] sm:$0xff]
        %v226 = vld [vmem:[%s178 + $0x98] sm:$0xff]
        %v227 = vld [vmem:[%s178 + $0xa0] sm:$0xff]
        %v228 = vld [vmem:[%s178 + $0xa8] sm:$0xff]
        %v229 = vld [vmem:[%s178 + $0xb0] sm:$0xff]
        %v230 = vld [vmem:[%s178 + $0xb8] sm:$0xff]
        %v231 = vld [vmem:[%s178 + $0xc0] sm:$0xff]
        %v232 = vld [vmem:[%s178 + $0xc8] sm:$0xff]
        %v233 = vld [vmem:[%s178 + $0xd0] sm:$0xff]
        %v234 = vld [vmem:[%s178 + $0xd8] sm:$0xff]
        %v235 = vld [vmem:[%s178 + $0xe0] sm:$0xff]
        %v236 = vld [vmem:[%s178 + $0xe8] sm:$0xff]
        %v237 = vld [vmem:[%s178 + $0xf0] sm:$0xff]
        %v238 = vld [vmem:[%s178 + $0xf8] sm:$0xff]
        %v239 = vld [vmem:[%s178 + $0x100] sm:$0xff]
        %v240 = vld [vmem:[%s178 + $0x108] sm:$0xff]
        %v241 = vld [vmem:[%s178 + $0x110] sm:$0xff]
        %v242 = vld [vmem:[%s178 + $0x118] sm:$0xff]
        %v243 = vld [vmem:[%s178 + $0x120] sm:$0xff]
        %v244 = vld [vmem:[%s178 + $0x128] sm:$0xff]
        %v245 = vld [vmem:[%s178 + $0x130] sm:$0xff]
        %v246 = vld [vmem:[%s178 + $0x138] sm:$0xff]
        %v247 = vld [vmem:[%s178 + $0x140] sm:$0xff]
        %v248 = vld [vmem:[%s178 + $0x148] sm:$0xff]
        %v249 = vld [vmem:[%s178 + $0x150] sm:$0xff]
        %v250 = vld [vmem:[%s178 + $0x158] sm:$0xff]
        %v251 = vld [vmem:[%s178 + $0x160] sm:$0xff]
        %v252 = vld [vmem:[%s178 + $0x168] sm:$0xff]
        %v253 = vld [vmem:[%s178 + $0x170] sm:$0xff]
        %v254 = vld [vmem:[%s178 + $0x178] sm:$0xff]
        %v255 = vld [vmem:[#allocation5] sm:$0xff]
        %v256 = vld [vmem:[#allocation5 + $0x8] sm:$0xff]
        %v257 = vld [vmem:[#allocation5 + $0x10] sm:$0xff]
        %v258 = vld [vmem:[#allocation5 + $0x18] sm:$0xff]
        %v259 = vld [vmem:[#allocation5 + $0x20] sm:$0xff]
        %v260 = vld [vmem:[#allocation5 + $0x28] sm:$0xff]
        %v261 = vld [vmem:[#allocation5 + $0x30] sm:$0xff]
        %v262 = vld [vmem:[#allocation5 + $0x38] sm:$0xff]
        %v263 = vld [vmem:[#allocation5 + $0x40] sm:$0xff]
        %v264 = vld [vmem:[#allocation5 + $0x48] sm:$0xff]
        %v265 = vld [vmem:[#allocation5 + $0x50] sm:$0xff]
        %v266 = vld [vmem:[#allocation5 + $0x58] sm:$0xff]
        %v267 = vld [vmem:[#allocation5 + $0x60] sm:$0xff]
        %v268 = vld [vmem:[#allocation5 + $0x68] sm:$0xff]
        %v269 = vld [vmem:[#allocation5 + $0x70] sm:$0xff]
        %v270 = vld [vmem:[#allocation5 + $0x78] sm:$0xff]
        %v271 = vld [vmem:[#allocation5 + $0x80] sm:$0xff]
        %v272 = vld [vmem:[#allocation5 + $0x88] sm:$0xff]
        %v273 = vld [vmem:[#allocation5 + $0x90] sm:$0xff]
        %v274 = vld [vmem:[#allocation5 + $0x98] sm:$0xff]
        %v275 = vld [vmem:[#allocation5 + $0xa0] sm:$0xff]
        %v276 = vld [vmem:[#allocation5 + $0xa8] sm:$0xff]
        %v277 = vld [vmem:[#allocation5 + $0xb0] sm:$0xff]
        %v278 = vld [vmem:[#allocation5 + $0xb8] sm:$0xff]
        %v279 = vld [vmem:[#allocation5 + $0xc0] sm:$0xff]
        %v280 = vld [vmem:[#allocation5 + $0xc8] sm:$0xff]
        %v281 = vld [vmem:[#allocation5 + $0xd0] sm:$0xff]
        %v282 = vld [vmem:[#allocation5 + $0xd8] sm:$0xff]
        %v283 = vld [vmem:[#allocation5 + $0xe0] sm:$0xff]
        %v284 = vld [vmem:[#allocation5 + $0xe8] sm:$0xff]
        %v285 = vld [vmem:[#allocation5 + $0xf0] sm:$0xff]
        %v286 = vld [vmem:[#allocation5 + $0xf8] sm:$0xff]
        %v287 = vld [vmem:[#allocation5 + $0x100] sm:$0xff]
        %v288 = vld [vmem:[#allocation5 + $0x108] sm:$0xff]
        %v289 = vld [vmem:[#allocation5 + $0x110] sm:$0xff]
        %v290 = vld [vmem:[#allocation5 + $0x118] sm:$0xff]
        %v291 = vld [vmem:[#allocation5 + $0x120] sm:$0xff]
        %v292 = vld [vmem:[#allocation5 + $0x128] sm:$0xff]
        %v293 = vld [vmem:[#allocation5 + $0x130] sm:$0xff]
        %v294 = vld [vmem:[#allocation5 + $0x138] sm:$0xff]
        %v295 = vld [vmem:[#allocation5 + $0x140] sm:$0xff]
        %v296 = vld [vmem:[#allocation5 + $0x148] sm:$0xff]
        %v297 = vld [vmem:[#allocation5 + $0x150] sm:$0xff]
        %v298 = vld [vmem:[#allocation5 + $0x158] sm:$0xff]
        %v299 = vld [vmem:[#allocation5 + $0x160] sm:$0xff]
        %v300 = vld [vmem:[#allocation5 + $0x168] sm:$0xff]
        %v301 = vld [vmem:[#allocation5 + $0x170] sm:$0xff]
        %v302 = vld [vmem:[#allocation5 + $0x178] sm:$0xff]
        %v303 = vld [vmem:[#allocation5 + $0x180] sm:$0xff]
        %v304 = vld [vmem:[#allocation5 + $0x188] sm:$0xff]
        %v305 = vld [vmem:[#allocation5 + $0x190] sm:$0xff]
        %v306 = vld [vmem:[#allocation5 + $0x198] sm:$0xff]
        %v307 = vld [vmem:[#allocation5 + $0x1a0] sm:$0xff]
        %v308 = vld [vmem:[#allocation5 + $0x1a8] sm:$0xff]
        %v309 = vld [vmem:[#allocation5 + $0x1b0] sm:$0xff]
        %v310 = vld [vmem:[#allocation5 + $0x1b8] sm:$0xff]
        %v311 = vld [vmem:[#allocation5 + $0x1c0] sm:$0xff]
        %v312 = vld [vmem:[#allocation5 + $0x1c8] sm:$0xff]
        %v313 = vld [vmem:[#allocation5 + $0x1d0] sm:$0xff]
        %v314 = vld [vmem:[#allocation5 + $0x1d8] sm:$0xff]
        %v315 = vld [vmem:[#allocation5 + $0x1e0] sm:$0xff]
        %v316 = vld [vmem:[#allocation5 + $0x1e8] sm:$0xff]
        %v317 = vld [vmem:[#allocation5 + $0x1f0] sm:$0xff]
        %v318 = vld [vmem:[#allocation5 + $0x1f8] sm:$0xff]
        %v319 = vld [vmem:[%s2] sm:$0x3]
        %v321 = vlaneseq
        %v322 = vshrl.u32 %v321, 7
        %v323 = vsub.s32 0, %v322
        %v324 = vrot.slane %v319, %v323
        %v325 = vlaneseq
        %v326 = vshrl.u32 %v325, 7
        %v327 = vsub.s32 1, %v326
        %v328 = vrot.slane %v319, %v327
        %331 = vmatprep.subr.mxu0 %v256
        %332 = vmatpush1.xpose.msra.mxu0 %v255
        %333 = vmatprep.subr.mxu0 %v258
        %334 = vmatpush1.xpose.msra.mxu0 %v257
        %335 = vmatprep.subr.mxu0 %v260
        %336 = vmatpush1.xpose.msra.mxu0 %v259
        %337 = vmatprep.subr.mxu0 %v262
        %338 = vmatpush1.xpose.msra.mxu0 %v261
        %339 = vmatprep.subr.mxu0 %v264
        %340 = vmatpush1.xpose.msra.mxu0 %v263
        %341 = vmatprep.subr.mxu0 %v266
        %342 = vmatpush1.xpose.msra.mxu0 %v265
        %343 = vmatprep.subr.mxu0 %v268
        %344 = vmatpush1.xpose.msra.mxu0 %v267
        %345 = vmatprep.subr.mxu0 %v270
        %346 = vmatpush1.xpose.msra.mxu0 %v269
        %347 = vmatprep.subr.mxu0 %v272
        %348 = vmatpush1.xpose.msra.mxu0 %v271
        %349 = vmatprep.subr.mxu0 %v274
        %350 = vmatpush1.xpose.msra.mxu0 %v273
        %351 = vmatprep.subr.mxu0 %v276
        %352 = vmatpush1.xpose.msra.mxu0 %v275
        %353 = vmatprep.subr.mxu0 %v278
        %354 = vmatpush1.xpose.msra.mxu0 %v277
        %355 = vmatprep.subr.mxu0 %v280
        %356 = vmatpush1.xpose.msra.mxu0 %v279
        %357 = vmatprep.subr.mxu0 %v282
        %358 = vmatpush1.xpose.msra.mxu0 %v281
        %359 = vmatprep.subr.mxu0 %v284
        %360 = vmatpush1.xpose.msra.mxu0 %v283
        %361 = vmatprep.subr.mxu0 %v286
        %362 = vmatpush1.xpose.msra.mxu0 %v285
        %363 = vmatprep.subr.mxu0 %v288
        %364 = vmatpush1.xpose.msra.mxu0 %v287
        %365 = vmatprep.subr.mxu0 %v290
        %366 = vmatpush1.xpose.msra.mxu0 %v289
        %367 = vmatprep.subr.mxu0 %v292
        %368 = vmatpush1.xpose.msra.mxu0 %v291
        %369 = vmatprep.subr.mxu0 %v294
        %370 = vmatpush1.xpose.msra.mxu0 %v293
        %371 = vmatprep.subr.mxu0 %v296
        %372 = vmatpush1.xpose.msra.mxu0 %v295
        %373 = vmatprep.subr.mxu0 %v298
        %374 = vmatpush1.xpose.msra.mxu0 %v297
        %375 = vmatprep.subr.mxu0 %v300
        %376 = vmatpush1.xpose.msra.mxu0 %v299
        %377 = vmatprep.subr.mxu0 %v302
        %378 = vmatpush1.xpose.msra.mxu0 %v301
        %379 = vmatprep.subr.mxu0 %v304
        %380 = vmatpush1.xpose.msra.mxu0 %v303
        %381 = vmatprep.subr.mxu0 %v306
        %382 = vmatpush1.xpose.msra.mxu0 %v305
        %383 = vmatprep.subr.mxu0 %v308
        %384 = vmatpush1.xpose.msra.mxu0 %v307
        %385 = vmatprep.subr.mxu0 %v310
        %386 = vmatpush1.xpose.msra.mxu0 %v309
        %387 = vmatprep.subr.mxu0 %v312
        %388 = vmatpush1.xpose.msra.mxu0 %v311
        %389 = vmatprep.subr.mxu0 %v314
        %390 = vmatpush1.xpose.msra.mxu0 %v313
        %391 = vmatprep.subr.mxu0 %v316
        %392 = vmatpush1.xpose.msra.mxu0 %v315
        %393 = vmatprep.subr.mxu0 %v318
        %394 = vmatpush1.xpose.msra.mxu0 %v317
        %395 = vmatprep.mubr.f32.mxu0 %v208
        %396 = vmatmul.mubr.f32.gmra.mrb[0].mxu0 %v207
        %v397 = vpop.f32.mrb[0].mxu0
        %v398 = vadd.f32 %v324, %v397
        %v399 = vpop.f32.mrb[0].mxu0
        %v400 = vadd.f32 %v328, %v399
        %401 = vmatprep.mubr.f32.mxu0 %v210
        %402 = vmatmul.mubr.f32.gmra.mrb[0].mxu0 %v209
        %v403 = vpop.f32.mrb[0].mxu0
        %v404 = vadd.f32 %v324, %v403
        %v405 = vpop.f32.mrb[0].mxu0
        %v406 = vadd.f32 %v328, %v405
        %407 = vmatprep.mubr.f32.mxu0 %v212
        %408 = vmatmul.mubr.f32.gmra.mrb[0].mxu0 %v211
        %v409 = vpop.f32.mrb[0].mxu0
        %v410 = vadd.f32 %v324, %v409
        %v411 = vpop.f32.mrb[0].mxu0
        %v412 = vadd.f32 %v328, %v411
        %413 = vmatprep.mubr.f32.mxu0 %v214
        %414 = vmatmul.mubr.f32.gmra.mrb[0].mxu0 %v213
        %v415 = vpop.f32.mrb[0].mxu0
        %v416 = vadd.f32 %v324, %v415
        %v417 = vpop.f32.mrb[0].mxu0
        %v418 = vadd.f32 %v328, %v417
        %419 = vmatprep.mubr.f32.mxu0 %v216
        %420 = vmatmul.mubr.f32.gmra.mrb[0].mxu0 %v215
        %v421 = vpop.f32.mrb[0].mxu0
        %v422 = vadd.f32 %v324, %v421
        %v423 = vpop.f32.mrb[0].mxu0
        %v424 = vadd.f32 %v328, %v423
        %425 = vmatprep.mubr.f32.mxu0 %v218
        %426 = vmatmul.mubr.f32.gmra.mrb[0].mxu0 %v217
        %v427 = vpop.f32.mrb[0].mxu0
        %v428 = vadd.f32 %v324, %v427
        %v429 = vpop.f32.mrb[0].mxu0
        %v430 = vadd.f32 %v328, %v429
        %431 = vmatprep.mubr.f32.mxu0 %v220
        %432 = vmatmul.mubr.f32.gmra.mrb[0].mxu0 %v219
        %v433 = vpop.f32.mrb[0].mxu0
        %v434 = vadd.f32 %v324, %v433
        %v435 = vpop.f32.mrb[0].mxu0
        %v436 = vadd.f32 %v328, %v435
        %437 = vmatprep.mubr.f32.mxu0 %v222
        %438 = vmatmul.mubr.f32.gmra.mrb[0].mxu0 %v221
        %v439 = vpop.f32.mrb[0].mxu0
        %v440 = vadd.f32 %v324, %v439
        %v441 = vpop.f32.mrb[0].mxu0
        %v442 = vadd.f32 %v328, %v441
        %443 = vmatprep.mubr.f32.mxu0 %v224
        %444 = vmatmul.mubr.f32.gmra.mrb[0].mxu0 %v223
        %v445 = vpop.f32.mrb[0].mxu0
        %v446 = vadd.f32 %v324, %v445
        %v447 = vpop.f32.mrb[0].mxu0
        %v448 = vadd.f32 %v328, %v447
        %449 = vmatprep.mubr.f32.mxu0 %v226
        %450 = vmatmul.mubr.f32.gmra.mrb[0].mxu0 %v225
        %v451 = vpop.f32.mrb[0].mxu0
        %v452 = vadd.f32 %v324, %v451
        %v453 = vpop.f32.mrb[0].mxu0
        %v454 = vadd.f32 %v328, %v453
        %455 = vmatprep.mubr.f32.mxu0 %v228
        %456 = vmatmul.mubr.f32.gmra.mrb[0].mxu0 %v227
        %v457 = vpop.f32.mrb[0].mxu0
        %v458 = vadd.f32 %v324, %v457
        %v459 = vpop.f32.mrb[0].mxu0
        %v460 = vadd.f32 %v328, %v459
        %461 = vmatprep.mubr.f32.mxu0 %v230
        %462 = vmatmul.mubr.f32.gmra.mrb[0].mxu0 %v229
        %v463 = vpop.f32.mrb[0].mxu0
        %v464 = vadd.f32 %v324, %v463
        %v465 = vpop.f32.mrb[0].mxu0
        %v466 = vadd.f32 %v328, %v465
        %467 = vmatprep.mubr.f32.mxu0 %v232
        %468 = vmatmul.mubr.f32.gmra.mrb[0].mxu0 %v231
        %v469 = vpop.f32.mrb[0].mxu0
        %v470 = vadd.f32 %v324, %v469
        %v471 = vpop.f32.mrb[0].mxu0
        %v472 = vadd.f32 %v328, %v471
        %473 = vmatprep.mubr.f32.mxu0 %v234
        %474 = vmatmul.mubr.f32.gmra.mrb[0].mxu0 %v233
        %v475 = vpop.f32.mrb[0].mxu0
        %v476 = vadd.f32 %v324, %v475
        %v477 = vpop.f32.mrb[0].mxu0
        %v478 = vadd.f32 %v328, %v477
        %479 = vmatprep.mubr.f32.mxu0 %v236
        %480 = vmatmul.mubr.f32.gmra.mrb[0].mxu0 %v235
        %v481 = vpop.f32.mrb[0].mxu0
        %v482 = vadd.f32 %v324, %v481
        %v483 = vpop.f32.mrb[0].mxu0
        %v484 = vadd.f32 %v328, %v483
        %485 = vmatprep.mubr.f32.mxu0 %v238
        %486 = vmatmul.mubr.f32.gmra.mrb[0].mxu0 %v237
        %v487 = vpop.f32.mrb[0].mxu0
        %v488 = vadd.f32 %v324, %v487
        %v489 = vpop.f32.mrb[0].mxu0
        %v490 = vadd.f32 %v328, %v489
        %491 = vmatprep.mubr.f32.mxu0 %v240
        %492 = vmatmul.mubr.f32.gmra.mrb[0].mxu0 %v239
        %v493 = vpop.f32.mrb[0].mxu0
        %v494 = vadd.f32 %v324, %v493
        %v495 = vpop.f32.mrb[0].mxu0
        %v496 = vadd.f32 %v328, %v495
        %497 = vmatprep.mubr.f32.mxu0 %v242
        %498 = vmatmul.mubr.f32.gmra.mrb[0].mxu0 %v241
        %v499 = vpop.f32.mrb[0].mxu0
        %v500 = vadd.f32 %v324, %v499
        %v501 = vpop.f32.mrb[0].mxu0
        %v502 = vadd.f32 %v328, %v501
        %503 = vmatprep.mubr.f32.mxu0 %v244
        %504 = vmatmul.mubr.f32.gmra.mrb[0].mxu0 %v243
        %v505 = vpop.f32.mrb[0].mxu0
        %v506 = vadd.f32 %v324, %v505
        %v507 = vpop.f32.mrb[0].mxu0
        %v508 = vadd.f32 %v328, %v507
        %509 = vmatprep.mubr.f32.mxu0 %v246
        %510 = vmatmul.mubr.f32.gmra.mrb[0].mxu0 %v245
        %v511 = vpop.f32.mrb[0].mxu0
        %v512 = vadd.f32 %v324, %v511
        %v513 = vpop.f32.mrb[0].mxu0
        %v514 = vadd.f32 %v328, %v513
        %515 = vmatprep.mubr.f32.mxu0 %v248
        %516 = vmatmul.mubr.f32.gmra.mrb[0].mxu0 %v247
        %v517 = vpop.f32.mrb[0].mxu0
        %v518 = vadd.f32 %v324, %v517
        %v519 = vpop.f32.mrb[0].mxu0
        %v520 = vadd.f32 %v328, %v519
        %521 = vmatprep.mubr.f32.mxu0 %v250
        %522 = vmatmul.mubr.f32.gmra.mrb[0].mxu0 %v249
        %v523 = vpop.f32.mrb[0].mxu0
        %v524 = vadd.f32 %v324, %v523
        %v525 = vpop.f32.mrb[0].mxu0
        %v526 = vadd.f32 %v328, %v525
        %527 = vmatprep.mubr.f32.mxu0 %v252
        %528 = vmatmul.mubr.f32.gmra.mrb[0].mxu0 %v251
        %v529 = vpop.f32.mrb[0].mxu0
        %v530 = vadd.f32 %v324, %v529
        %v531 = vpop.f32.mrb[0].mxu0
        %v532 = vadd.f32 %v328, %v531
        %533 = vmatprep.mubr.f32.mxu0 %v254
        %534 = vmatmul.mubr.f32.gmra.mrb[0].mxu0 %v253
        %v535 = vpop.f32.mrb[0].mxu0
        %v536 = vadd.f32 %v324, %v535
        %v537 = vpop.f32.mrb[0].mxu0
        %v538 = vadd.f32 %v328, %v537
        %539 = vdwg.mxu0
        %540 = vst [vmem:[%s204] sm:$0xff] %v398
        %541 = vst [vmem:[%s204 + $0x8] sm:$0xff] %v400
        %542 = vst [vmem:[%s204 + $0x10] sm:$0xff] %v404
        %543 = vst [vmem:[%s204 + $0x18] sm:$0xff] %v406
        %544 = vst [vmem:[%s204 + $0x20] sm:$0xff] %v410
        %545 = vst [vmem:[%s204 + $0x28] sm:$0xff] %v412
        %546 = vst [vmem:[%s204 + $0x30] sm:$0xff] %v416
        %547 = vst [vmem:[%s204 + $0x38] sm:$0xff] %v418
        %548 = vst [vmem:[%s204 + $0x40] sm:$0xff] %v422
        %549 = vst [vmem:[%s204 + $0x48] sm:$0xff] %v424
        %550 = vst [vmem:[%s204 + $0x50] sm:$0xff] %v428
        %551 = vst [vmem:[%s204 + $0x58] sm:$0xff] %v430
        %552 = vst [vmem:[%s204 + $0x60] sm:$0xff] %v434
        %553 = vst [vmem:[%s204 + $0x68] sm:$0xff] %v436
        %554 = vst [vmem:[%s204 + $0x70] sm:$0xff] %v440
        %555 = vst [vmem:[%s204 + $0x78] sm:$0xff] %v442
        %556 = vst [vmem:[%s204 + $0x80] sm:$0xff] %v446
        %557 = vst [vmem:[%s204 + $0x88] sm:$0xff] %v448
        %558 = vst [vmem:[%s204 + $0x90] sm:$0xff] %v452
        %559 = vst [vmem:[%s204 + $0x98] sm:$0xff] %v454
        %560 = vst [vmem:[%s204 + $0xa0] sm:$0xff] %v458
        %561 = vst [vmem:[%s204 + $0xa8] sm:$0xff] %v460
        %562 = vst [vmem:[%s204 + $0xb0] sm:$0xff] %v464
        %563 = vst [vmem:[%s204 + $0xb8] sm:$0xff] %v466
        %564 = vst [vmem:[%s204 + $0xc0] sm:$0xff] %v470
        %565 = vst [vmem:[%s204 + $0xc8] sm:$0xff] %v472
        %566 = vst [vmem:[%s204 + $0xd0] sm:$0xff] %v476
        %567 = vst [vmem:[%s204 + $0xd8] sm:$0xff] %v478
        %568 = vst [vmem:[%s204 + $0xe0] sm:$0xff] %v482
        %569 = vst [vmem:[%s204 + $0xe8] sm:$0xff] %v484
        %570 = vst [vmem:[%s204 + $0xf0] sm:$0xff] %v488
        %571 = vst [vmem:[%s204 + $0xf8] sm:$0xff] %v490
        %572 = vst [vmem:[%s204 + $0x100] sm:$0xff] %v494
        %573 = vst [vmem:[%s204 + $0x108] sm:$0xff] %v496
        %574 = vst [vmem:[%s204 + $0x110] sm:$0xff] %v500
        %575 = vst [vmem:[%s204 + $0x118] sm:$0xff] %v502
        %576 = vst [vmem:[%s204 + $0x120] sm:$0xff] %v506
        %577 = vst [vmem:[%s204 + $0x128] sm:$0xff] %v508
        %578 = vst [vmem:[%s204 + $0x130] sm:$0xff] %v512
        %579 = vst [vmem:[%s204 + $0x138] sm:$0xff] %v514
        %580 = vst [vmem:[%s204 + $0x140] sm:$0xff] %v518
        %581 = vst [vmem:[%s204 + $0x148] sm:$0xff] %v520
        %582 = vst [vmem:[%s204 + $0x150] sm:$0xff] %v524
        %583 = vst [vmem:[%s204 + $0x158] sm:$0xff] %v526
        %584 = vst [vmem:[%s204 + $0x160] sm:$0xff] %v530
        %585 = vst [vmem:[%s204 + $0x168] sm:$0xff] %v532
        %586 = vst [vmem:[%s204 + $0x170] sm:$0xff] %v536
        %587 = vst [vmem:[%s204 + $0x178] sm:$0xff] %v538
        %s588 = sand.u32 %s97, 1
        %s589 = scalar_lea.sflag [#allocation4], %s588
        %s590 = sand.u32 %s97, 1
        %s591 = smul.addr %s590, 384
        %s592 = scalar_lea.vmem [#allocation7], %s591
        // Predicated region
        $region41: #{tpu_custom_call.1} parent=31 // pred_check
          %p593 = pneg %p107
        $region42: #{tpu_custom_call.1} parent=31 // pred_check_branch
          %595 = sbr.rel (%p593) target = $region44
        $region43: #{tpu_custom_call.1} parent=31 // pred_region
          %s596 = smul.u32 24, %s21
          %s598 = ssub.s32 6144, 6144
          %599 = vsyncadd %s589, %s598
          %s600 = smul.addr %s596, 2
          %s601 = smul.addr %s600, 128
          %s602 = scalar_lea.hbm %s3, %s601
          %s603 = sshll.u32 %s592, 4
          %s604 = int_to_ptr.vmem [resolvable:$true] %s603
          %609 = dma.vmem_to_hbm [thread:$0]  %s604, 6144, %s602, %s589, 256, 256, 16
        $region44: #{tpu_custom_call.1} parent=31 // pred_fallthru
          _
      $region32: #{tpu_custom_call.1} parent=5 // pred_fallthru
        _
      %p610 = scmp.le.s32.totalorder 2, %s16
      // Predicated region
      $region45: #{tpu_custom_call.1} parent=5 // pred_check
        %p611 = pneg %p610
      $region46: #{tpu_custom_call.1} parent=5 // pred_check_branch
        %613 = sbr.rel (%p611) target = $region48
      $region47: #{tpu_custom_call.1} parent=5 // pred_region
        %s614 = ssub.s32 %s16, 2
        // Predicated region
        $region49: #{tpu_custom_call.1} parent=47 // pred_check
          %p615 = pneg %p113
        $region50: #{tpu_custom_call.1} parent=47 // pred_check_branch
          %617 = sbr.rel (%p615) target = $region52
        $region51: #{tpu_custom_call.1} parent=47 // pred_region
          %s618 = sand.u32 %s98, 1
          %s619 = scalar_lea.sflag [#allocation4], %s618
          %s620 = sand.u32 %s98, 1
          %s621 = smul.addr %s620, 384
          %s622 = scalar_lea.vmem [#allocation7], %s621
          %623 = dma.done %s619, 6144
        $region52: #{tpu_custom_call.1} parent=47 // pred_fallthru
          _
      $region48: #{tpu_custom_call.1} parent=5 // pred_fallthru
        _
    $region6: #{tpu_custom_call.1} parent=1 // loop_footer
      %s20 = sadd.s32 1, %s16
    $region7: #{tpu_custom_call.1} parent=1 // loop_footer_branch
      %15 = sbr.rel target = $region3
    $region8: #{tpu_custom_call.1} parent=1 // loop_exit
      _
    %624 = vsyncpa [#allocation3], 1
    %s625 = scalar_lea.sflag [#allocation3], 1
    %626 = vsyncpa %s625, 1
    %627 = vsyncpa [#allocation6], 1
    %628 = vsyncpa [#allocation4], 1
    %s629 = scalar_lea.sflag [#allocation4], 1
    %630 = vsyncpa %s629, 1

</llo_original>
